<compile_context>
chip_gen: v6e
topology: v6e:2x2x1
jax: 0.10.0
libtpu: 0.0.40
codegen_flags: <defaults>
</compile_context>

<pallas_src>
import jax
import jax.numpy as jnp
from jax.experimental import pallas as pl
from jax.experimental.pallas import tpu as pltpu


def _vmem_budgets():
    """Generation-aware (planning budget, Mosaic scoped limit) in bytes."""
    cap = 64 << 20                                  # conservative default (v7x)
    try:
        cap = int(pltpu.get_tpu_info().vmem_capacity_bytes)
    except Exception:                               # non-TPU / interpret fallback
        pass
    budget = (cap * 7) // 16                        # 28 MiB (64 MiB parts) / 56 MiB (128 MiB)
    limit = min((cap * 3) // 4, 96 << 20)           # 48 MiB (v7x) / 96 MiB (v5e, v6e)
    return budget, limit


def _make_sgap_kernel(num_feats, inv_p, mxu_dtype):
    """Fused: sum P feature tiles (f32), matmul with W, scale by 1/P, add bias."""

    def kernel(*refs):
        feat_refs = refs[:num_feats]
        w_ref = refs[num_feats]
        b_ref = refs[num_feats + 1]
        o_ref = refs[num_feats + 2]
        acc_ref = refs[num_feats + 3]

        # pre_msg_op.aggregate == mean: exact f32 sum into one VMEM scratch.
        acc_ref[...] = feat_refs[0][...].astype(jnp.float32)
        for fr in feat_refs[1:]:
            acc_ref[...] += fr[...].astype(jnp.float32)

        # base_model == Linear: MXU on the features' native dtype, f32 accumulate.
        out = jnp.dot(acc_ref[...].astype(mxu_dtype), w_ref[...],
                      preferred_element_type=jnp.float32)
        out = out * inv_p + b_ref[...].astype(jnp.float32)
        o_ref[...] = out.astype(o_ref.dtype)

    return kernel


def _choose_tile_n(N, P, F, O_p, feat_itemsize, w_itemsize, *, max_tile_n, budget):
    """Largest node tile fitting the VMEM budget, incl. in-kernel temporaries."""
    per_row = (2 * P * F * feat_itemsize        # P feature tiles, double-buffered
               + 2 * O_p * feat_itemsize        # output tile, double-buffered
               + 2 * F * 4                      # f32 accumulator scratch + 1 f32 temp
               + F * feat_itemsize              # downcast MXU operand temp
               + 3 * O_p * 4)                   # f32 matmul result / epilogue temps
    fixed = F * O_p * w_itemsize + O_p * w_itemsize   # single-buffered weight + bias
    tile_n = (budget - fixed) // per_row
    tile_n = int(min(tile_n, max_tile_n, N))

    if N >= 32:
        # Keep >= 4 grid steps: both v7x cores get work AND each core still has
        # >= 2 steps, so the feature DMA overlaps compute inside every core.
        tile_n = min(tile_n, -(-N // 4))

    # dtype-aware sublane rounding (8 f32 / 16 bf16 / 32 int8); prefer MXU-pass
    # friendly multiples of 256 / 128 when the budget allows them.
    sub = max(8, 32 // feat_itemsize)
    if tile_n >= 512:
        tile_n = (tile_n // 256) * 256
    elif tile_n >= 128:
        tile_n = (tile_n // 128) * 128
    else:
        tile_n = max(sub, (tile_n // sub) * sub)
    return tile_n


def sgap_forward(transferred_feat_list, weight, bias, *, max_tile_n=1024):
    """Equivalent of BaseSGAPModelDist.forward (mean aggregation + Linear).

    `weight` is (feat_dim, output_dim), i.e. the transpose of torch Linear's
    stored (out_features, in_features) layout.
    """
    P = len(transferred_feat_list)
    N, F = transferred_feat_list[0].shape
    O = weight.shape[1]
    feat_dtype = transferred_feat_list[0].dtype
    feat_itemsize = jnp.dtype(feat_dtype).itemsize
    w_itemsize = jnp.dtype(weight.dtype).itemsize

    budget, vmem_limit = _vmem_budgets()

    # Lane-dense output (multiple of 128) only when the extra padded-output
    # traffic (+ post-slice) is small next to the dominant feature stream.
    o_pad = (-O) % 128
    if o_pad:
        extra_bytes = 2 * N * o_pad * feat_itemsize
        feat_bytes = (P * N * F + N * O) * feat_itemsize
        if extra_bytes * 8 > feat_bytes:
            o_pad = 0
    O_p = O + o_pad
    if o_pad:
        weight = jnp.pad(weight, ((0, 0), (0, o_pad)))
        bias = jnp.pad(bias, (0, o_pad))
    bias2d = bias.reshape(1, O_p)

    tile_n = _choose_tile_n(N, P, F, O_p, feat_itemsize, w_itemsize,
                            max_tile_n=max_tile_n, budget=budget)
    # No host-side node padding: the boundary block is masked by Pallas and the
    # computation is row-independent, so garbage rows never reach valid output.
    grid = (pl.cdiv(N, tile_n),)

    inv_p = 1.0 / float(P)
    kernel = _make_sgap_kernel(P, inv_p, feat_dtype)

    cost = pl.CostEstimate(
        flops=int(2 * N * F * O_p + P * N * F),
        transcendentals=0,
        bytes_accessed=int((P * N * F + N * O_p) * feat_itemsize
                           + (F * O_p + O_p) * w_itemsize),
    )

    feat_spec = pl.BlockSpec((tile_n, F), lambda i: (i, 0))
    # Grid-invariant operands: single pipeline buffer (no wasted second copy).
    w_spec = pl.BlockSpec((F, O_p), lambda i: (0, 0), pipeline_mode=pl.Buffered(1))
    b_spec = pl.BlockSpec((1, O_p), lambda i: (0, 0), pipeline_mode=pl.Buffered(1))

    out = pl.pallas_call(
        kernel,
        out_shape=jax.ShapeDtypeStruct((N, O_p), feat_dtype),
        grid_spec=pltpu.PrefetchScalarGridSpec(
            num_scalar_prefetch=0,
            grid=grid,
            in_specs=[feat_spec] * P + [w_spec, b_spec],
            out_specs=pl.BlockSpec((tile_n, O_p), lambda i: (i, 0)),
            scratch_shapes=[pltpu.VMEM((tile_n, F), jnp.float32)],
        ),
        compiler_params=pltpu.CompilerParams(
            dimension_semantics=("parallel",),
            vmem_limit_bytes=int(vmem_limit),
        ),
        cost_estimate=cost,
    )(*transferred_feat_list, weight, bias2d)

    if o_pad:
        out = out[:, :O]
    return out


def _reference(feats, weight, bias):
    mean = jnp.mean(jnp.stack([f.astype(jnp.float32) for f in feats], 0), axis=0)
    return jnp.dot(mean, weight.astype(jnp.float32),
                   precision=jax.lax.Precision.HIGHEST) + bias.astype(jnp.float32)


if __name__ == "__main__":
    key = jax.random.PRNGKey(0)

    # (prop_steps, num_nodes, feat_dim, output_dim) — small, module-consistent.
    configs = [
        (3, 64, 32, 16),     # divisible N (plain path)
        (2, 50, 64, 8),      # N % tile_n != 0  -> masked boundary block
        (6, 256, 512, 40),   # wide features    -> lane-dense output padding path
    ]

    for (prop_steps, num_nodes, feat_dim, output_dim) in configs:
        key, k_feat, k_w, k_b = jax.random.split(key, 4)
        feat_keys = jax.random.split(k_feat, prop_steps)
        # transferred_feat_list: one (N, F) matrix per propagation hop.
        feats = [jax.random.normal(fk, (num_nodes, feat_dim), dtype=jnp.float32)
                 for fk in feat_keys]

        # Deterministic Linear(feat_dim, output_dim) params (torch-style init).
        # NOTE: torch stores weight as (out, in); we pass the (in, out) transpose.
        bound = 1.0 / (feat_dim ** 0.5)
        weight = jax.random.uniform(k_w, (feat_dim, output_dim),
                                    minval=-bound, maxval=bound, dtype=jnp.float32)
        bias = jax.random.uniform(k_b, (output_dim,),
                                  minval=-bound, maxval=bound, dtype=jnp.float32)

        out = jax.block_until_ready(sgap_forward(feats, weight, bias))
        ref = _reference(feats, weight, bias)
        assert out.shape == (num_nodes, output_dim)
        assert jnp.allclose(out, ref, atol=5e-3, rtol=5e-3), \
            f"mismatch for config {(prop_steps, num_nodes, feat_dim, output_dim)}"

    # TODO(synk): preprocess()/postprocess() (graph propagation + softmax) and the
    # idx-gather in evaluate_forward are host-side glue outside forward().
    print("KERNEL_OK")
</pallas_src>

<mosaic_0001>
module attributes {stable_mosaic.version = 11 : i64} {
  func.func @kernel(%arg0: i32, %arg1: memref<16x32xf32, #tpu.memory_space<vmem>>, %arg2: memref<16x32xf32, #tpu.memory_space<vmem>>, %arg3: memref<16x32xf32, #tpu.memory_space<vmem>>, %arg4: memref<32x16xf32, #tpu.memory_space<vmem>>, %arg5: memref<1x16xf32, #tpu.memory_space<vmem>>, %arg6: memref<16x16xf32, #tpu.memory_space<vmem>>, %arg7: memref<16x32xf32, #tpu.memory_space<vmem>>) attributes {dimension_semantics = [#tpu.dimension_semantics<parallel>], iteration_bounds = array<i64: 4>, scalar_prefetch = 0 : i64, scratch_operands = 1 : i64, tpu.core_type = #tpu.core_type<tc>, window_params = [{transform_indices = @transform_0, window_bounds = array<i64: 16, 32>}, {transform_indices = @transform_1, window_bounds = array<i64: 16, 32>}, {transform_indices = @transform_2, window_bounds = array<i64: 16, 32>}, {pipeline_mode = #tpu.pipeline_mode<synchronous>, transform_indices = @transform_3, window_bounds = array<i64: 32, 16>}, {pipeline_mode = #tpu.pipeline_mode<synchronous>, transform_indices = @transform_4, window_bounds = array<i64: 1, 16>}, {transform_indices = @transform_5, window_bounds = array<i64: 16, 16>}]} {
    %c0 = arith.constant 0 : index
    %c0_0 = arith.constant 0 : index
    %0 = vector.load %arg1[%c0, %c0_0] : memref<16x32xf32, #tpu.memory_space<vmem>>, vector<16x32xf32>
    %c0_1 = arith.constant 0 : index
    %c0_2 = arith.constant 0 : index
    %1 = vector.load %arg7[%c0_1, %c0_2] : memref<16x32xf32, #tpu.memory_space<vmem>>, vector<16x32xf32>
    tpu.vector_store %arg7[%c0_1, %c0_2], %0 {strides = array<i32>} : memref<16x32xf32, #tpu.memory_space<vmem>>, vector<16x32xf32>,
    %c0_3 = arith.constant 0 : index
    %c0_4 = arith.constant 0 : index
    %2 = vector.load %arg7[%c0_3, %c0_4] : memref<16x32xf32, #tpu.memory_space<vmem>>, vector<16x32xf32>
    %c0_5 = arith.constant 0 : index
    %c0_6 = arith.constant 0 : index
    %3 = vector.load %arg2[%c0_5, %c0_6] : memref<16x32xf32, #tpu.memory_space<vmem>>, vector<16x32xf32>
    %4 = arith.addf %2, %3 : vector<16x32xf32>
    %c0_7 = arith.constant 0 : index
    %c0_8 = arith.constant 0 : index
    %5 = vector.load %arg7[%c0_7, %c0_8] : memref<16x32xf32, #tpu.memory_space<vmem>>, vector<16x32xf32>
    tpu.vector_store %arg7[%c0_7, %c0_8], %4 {strides = array<i32>} : memref<16x32xf32, #tpu.memory_space<vmem>>, vector<16x32xf32>,
    %c0_9 = arith.constant 0 : index
    %c0_10 = arith.constant 0 : index
    %6 = vector.load %arg7[%c0_9, %c0_10] : memref<16x32xf32, #tpu.memory_space<vmem>>, vector<16x32xf32>
    %c0_11 = arith.constant 0 : index
    %c0_12 = arith.constant 0 : index
    %7 = vector.load %arg3[%c0_11, %c0_12] : memref<16x32xf32, #tpu.memory_space<vmem>>, vector<16x32xf32>
    %8 = arith.addf %6, %7 : vector<16x32xf32>
    %c0_13 = arith.constant 0 : index
    %c0_14 = arith.constant 0 : index
    %9 = vector.load %arg7[%c0_13, %c0_14] : memref<16x32xf32, #tpu.memory_space<vmem>>, vector<16x32xf32>
    tpu.vector_store %arg7[%c0_13, %c0_14], %8 {strides = array<i32>} : memref<16x32xf32, #tpu.memory_space<vmem>>, vector<16x32xf32>,
    %c0_15 = arith.constant 0 : index
    %c0_16 = arith.constant 0 : index
    %10 = vector.load %arg7[%c0_15, %c0_16] : memref<16x32xf32, #tpu.memory_space<vmem>>, vector<16x32xf32>
    %c0_17 = arith.constant 0 : index
    %c0_18 = arith.constant 0 : index
    %11 = vector.load %arg4[%c0_17, %c0_18] : memref<32x16xf32, #tpu.memory_space<vmem>>, vector<32x16xf32>
    %cst = arith.constant dense<0.000000e+00> : vector<16x16xf32>
    %12 = tpu.matmul %10, %11, %cst {dimension_numbers = #tpu.dot_dimension_numbers<[1], [0], [0], [1], [0, 0, 1, 1], [], []>} : vector<16x32xf32>, vector<32x16xf32>, vector<16x16xf32> -> vector<16x16xf32>
    %cst_19 = arith.constant 0.333333343 : f32
    %13 = vector.broadcast %cst_19 : f32 to vector<16x16xf32>
    %14 = arith.mulf %12, %13 : vector<16x16xf32>
    %c0_20 = arith.constant 0 : index
    %c0_21 = arith.constant 0 : index
    %15 = vector.load %arg5[%c0_20, %c0_21] : memref<1x16xf32, #tpu.memory_space<vmem>>, vector<1x16xf32>
    %16 = vector.broadcast %15 : vector<1x16xf32> to vector<16x16xf32>
    %17 = arith.addf %14, %16 : vector<16x16xf32>
    %c0_22 = arith.constant 0 : index
    %c0_23 = arith.constant 0 : index
    %18 = vector.load %arg6[%c0_22, %c0_23] : memref<16x16xf32, #tpu.memory_space<vmem>>, vector<16x16xf32>
    tpu.vector_store %arg6[%c0_22, %c0_23], %17 {strides = array<i32>} : memref<16x16xf32, #tpu.memory_space<vmem>>, vector<16x16xf32>,
    return
  }
  func.func @transform_0(%arg0: i32) -> (i32, i32) {
    %c0_i32 = arith.constant 0 : i32
    %c0_i32_0 = arith.constant 0 : i32
    return %arg0, %c0_i32 : i32, i32
  }
  func.func @transform_1(%arg0: i32) -> (i32, i32) {
    %c0_i32 = arith.constant 0 : i32
    %c0_i32_0 = arith.constant 0 : i32
    return %arg0, %c0_i32 : i32, i32
  }
  func.func @transform_2(%arg0: i32) -> (i32, i32) {
    %c0_i32 = arith.constant 0 : i32
    %c0_i32_0 = arith.constant 0 : i32
    return %arg0, %c0_i32 : i32, i32
  }
  func.func @transform_3(%arg0: i32) -> (i32, i32) {
    %c0_i32 = arith.constant 0 : i32
    %c0_i32_0 = arith.constant 0 : i32
    %c0_i32_1 = arith.constant 0 : i32
    return %c0_i32, %c0_i32_0 : i32, i32
  }
  func.func @transform_4(%arg0: i32) -> (i32, i32) {
    %c0_i32 = arith.constant 0 : i32
    %c0_i32_0 = arith.constant 0 : i32
    %c0_i32_1 = arith.constant 0 : i32
    return %c0_i32, %c0_i32_0 : i32, i32
  }
  func.func @transform_5(%arg0: i32) -> (i32, i32) {
    %c0_i32 = arith.constant 0 : i32
    %c0_i32_0 = arith.constant 0 : i32
    return %arg0, %c0_i32 : i32, i32
  }
}

</mosaic_0001>

<llo_original>
// kernel: tpu_custom_call.1
$region0: #{tpu_custom_call.1}
  #allocation0 [shape = 'u32[]', space=smem, size = 0x4, offset = 0x4, fixed_abs, tag = 'smem constant byte address 0x4 - core index']
  #allocation1 [shape = 'u32[144,128]{1,0:T(1,128)}', space=vmem, size = 0x12000, scoped, tag = 'internal scratch']
  #allocation2 [shape = 'f32[16,32]{1,0:T(8,128)}', space=vmem, size = 0x2000, scoped, tag = 'scratch operand']
  %s0 = inlined_call_operand.vmem [shape: f32[64,32], index: 0, kind: input, shape index: {}]
  %s1 = inlined_call_operand.vmem [shape: f32[64,32], index: 1, kind: input, shape index: {}]
  %s2 = inlined_call_operand.vmem [shape: f32[64,32], index: 2, kind: input, shape index: {}]
  %s3 = inlined_call_operand.vmem [shape: f32[32,16], index: 3, kind: input, shape index: {}]
  %s4 = inlined_call_operand.vmem [shape: f32[1,16], index: 4, kind: input, shape index: {}]
  %s5 = inlined_call_operand.vmem [shape: f32[64,16], index: 5, kind: output, shape index: {}]
  %s6 = sld [smem:[#allocation0]]
  $region53: #{tpu_custom_call.1} parent=0
    _
  %s8 = ssub.s32 1, %s6
  %s9 = scalar_select 0, %s8, %s6
  loop: start=0, step=1, limit=6
  $region2: #{tpu_custom_call.1} parent=0 // loop_pre_header
    _
  $region3: #{tpu_custom_call.1} parent=0 // loop_header
    %s11 = sphi 0, %s15
    %p12 = scmp.ge.s32.totalorder %s11, 6
    %s21 = sphi 0, %s23
    %s24 = sphi 0, %s21
    %s25 = sphi 0, %s24
    %s41 = sphi 0, %s25
    %s47 = sphi 0, %s49
    %s50 = sphi 0, %s47
    %s51 = sphi 0, %s50
    %s67 = sphi 0, %s51
    %s73 = sphi 0, %s75
    %s76 = sphi 0, %s73
    %s77 = sphi 0, %s76
    %s93 = sphi 0, %s77
    %s97 = sphi 0, %s97
    %s99 = sphi 0, %s97
    %s100 = sphi 0, %s99
    %s114 = sphi 0, %s100
    %s118 = sphi 0, %s118
    %s120 = sphi 0, %s118
    %s121 = sphi 0, %s120
    %s135 = sphi 0, %s121
    %s141 = sphi 0, %s143
    %s144 = sphi 0, %s141
    %s145 = sphi 0, %s144
    %s161 = sphi 0, %s145
  $region4: #{tpu_custom_call.1} parent=0 // loop_header_branch
    %14 = sbr.rel (%p12) target = $region8
  $region5: #{tpu_custom_call.1} parent=0 // loop_body
    %s16 = ssub.s32 %s11, 1
    %s17 = ssub.s32 %s11, 2
    %s18 = sadd.s32 %s11, 1
    %s19 = ssub.s32 %s11, %s18
    %p20 = scmp.eq.s32.totalorder %s19, 0
    %s22 = sadd.s32 %s21, 1
    %s23 = scalar_select %p20, %s21, %s22
    %p26 = pneg %p20
    %p27 = scmp.eq.s32.totalorder %s11, 3
    %p28 = por %p26, %p27
    %p29 = scmp.ne.s32.totalorder %s21, %s24
    %p30 = scmp.eq.s32.totalorder %s11, 0
    %p31 = por %p29, %p30
    %p32 = scmp.ne.s32.totalorder %s21, %s24
    %p33 = scmp.eq.s32.totalorder %s16, 3
    %p34 = por %p32, %p33
    %p35 = scmp.ne.s32.totalorder %s24, %s25
    %p36 = scmp.eq.s32.totalorder %s16, 0
    %p37 = por %p35, %p36
    %p38 = scmp.ne.s32.totalorder %s24, %s25
    %p39 = scmp.eq.s32.totalorder %s17, 3
    %p40 = por %p38, %p39
    %p42 = scmp.ne.s32.totalorder %s25, %s41
    %p43 = scmp.eq.s32.totalorder %s17, 0
    %p44 = por %p42, %p43
    %s45 = ssub.s32 %s11, %s18
    %p46 = scmp.eq.s32.totalorder %s45, 0
    %s48 = sadd.s32 %s47, 1
    %s49 = scalar_select %p46, %s47, %s48
    %p52 = pneg %p46
    %p53 = scmp.eq.s32.totalorder %s11, 3
    %p54 = por %p52, %p53
    %p55 = scmp.ne.s32.totalorder %s47, %s50
    %p56 = scmp.eq.s32.totalorder %s11, 0
    %p57 = por %p55, %p56
    %p58 = scmp.ne.s32.totalorder %s47, %s50
    %p59 = scmp.eq.s32.totalorder %s16, 3
    %p60 = por %p58, %p59
    %p61 = scmp.ne.s32.totalorder %s50, %s51
    %p62 = scmp.eq.s32.totalorder %s16, 0
    %p63 = por %p61, %p62
    %p64 = scmp.ne.s32.totalorder %s50, %s51
    %p65 = scmp.eq.s32.totalorder %s17, 3
    %p66 = por %p64, %p65
    %p68 = scmp.ne.s32.totalorder %s51, %s67
    %p69 = scmp.eq.s32.totalorder %s17, 0
    %p70 = por %p68, %p69
    %s71 = ssub.s32 %s11, %s18
    %p72 = scmp.eq.s32.totalorder %s71, 0
    %s74 = sadd.s32 %s73, 1
    %s75 = scalar_select %p72, %s73, %s74
    %p78 = pneg %p72
    %p79 = scmp.eq.s32.totalorder %s11, 3
    %p80 = por %p78, %p79
    %p81 = scmp.ne.s32.totalorder %s73, %s76
    %p82 = scmp.eq.s32.totalorder %s11, 0
    %p83 = por %p81, %p82
    %p84 = scmp.ne.s32.totalorder %s73, %s76
    %p85 = scmp.eq.s32.totalorder %s16, 3
    %p86 = por %p84, %p85
    %p87 = scmp.ne.s32.totalorder %s76, %s77
    %p88 = scmp.eq.s32.totalorder %s16, 0
    %p89 = por %p87, %p88
    %p90 = scmp.ne.s32.totalorder %s76, %s77
    %p91 = scmp.eq.s32.totalorder %s17, 3
    %p92 = por %p90, %p91
    %p94 = scmp.ne.s32.totalorder %s77, %s93
    %p95 = scmp.eq.s32.totalorder %s17, 0
    %p96 = por %p94, %p95
    %s98 = sadd.s32 %s97, 1
    %p101 = scmp.eq.s32.totalorder %s11, 3
    %p102 = scmp.ne.s32.totalorder %s97, %s99
    %p103 = scmp.eq.s32.totalorder %s11, 0
    %p104 = por %p102, %p103
    %p105 = scmp.ne.s32.totalorder %s97, %s99
    %p106 = scmp.eq.s32.totalorder %s16, 3
    %p107 = por %p105, %p106
    %p108 = scmp.ne.s32.totalorder %s99, %s100
    %p109 = scmp.eq.s32.totalorder %s16, 0
    %p110 = por %p108, %p109
    %p111 = scmp.ne.s32.totalorder %s99, %s100
    %p112 = scmp.eq.s32.totalorder %s17, 3
    %p113 = por %p111, %p112
    %p115 = scmp.ne.s32.totalorder %s100, %s114
    %p116 = scmp.eq.s32.totalorder %s17, 0
    %p117 = por %p115, %p116
    %s119 = sadd.s32 %s118, 1
    %p122 = scmp.eq.s32.totalorder %s11, 3
    %p123 = scmp.ne.s32.totalorder %s118, %s120
    %p124 = scmp.eq.s32.totalorder %s11, 0
    %p125 = por %p123, %p124
    %p126 = scmp.ne.s32.totalorder %s118, %s120
    %p127 = scmp.eq.s32.totalorder %s16, 3
    %p128 = por %p126, %p127
    %p129 = scmp.ne.s32.totalorder %s120, %s121
    %p130 = scmp.eq.s32.totalorder %s16, 0
    %p131 = por %p129, %p130
    %p132 = scmp.ne.s32.totalorder %s120, %s121
    %p133 = scmp.eq.s32.totalorder %s17, 3
    %p134 = por %p132, %p133
    %p136 = scmp.ne.s32.totalorder %s121, %s135
    %p137 = scmp.eq.s32.totalorder %s17, 0
    %p138 = por %p136, %p137
    %s139 = ssub.s32 %s11, %s18
    %p140 = scmp.eq.s32.totalorder %s139, 0
    %s142 = sadd.s32 %s141, 1
    %s143 = scalar_select %p140, %s141, %s142
    %p146 = pneg %p140
    %p147 = scmp.eq.s32.totalorder %s11, 3
    %p148 = por %p146, %p147
    %p149 = scmp.ne.s32.totalorder %s141, %s144
    %p150 = scmp.eq.s32.totalorder %s11, 0
    %p151 = por %p149, %p150
    %p152 = scmp.ne.s32.totalorder %s141, %s144
    %p153 = scmp.eq.s32.totalorder %s16, 3
    %p154 = por %p152, %p153
    %p155 = scmp.ne.s32.totalorder %s144, %s145
    %p156 = scmp.eq.s32.totalorder %s16, 0
    %p157 = por %p155, %p156
    %p158 = scmp.ne.s32.totalorder %s144, %s145
    %p159 = scmp.eq.s32.totalorder %s17, 3
    %p160 = por %p158, %p159
    %p162 = scmp.ne.s32.totalorder %s145, %s161
    %p163 = scmp.eq.s32.totalorder %s17, 0
    %p164 = por %p162, %p163
    %p165 = scmp.le.s32.totalorder 1, %s11
    %p166 = scmp.lt.s32.totalorder %s11, 5
    %p167 = pnand %p165, %p166
    %p168 = pneg %p167
    // Predicated region
    $region9: #{tpu_custom_call.1} parent=5 // pred_check
      _
    $region10: #{tpu_custom_call.1} parent=5 // pred_check_branch
      %170 = sbr.rel (%p167) target = $region12
    $region11: #{tpu_custom_call.1} parent=5 // pred_region
      %s171 = ssub.s32 %s11, 1
      // Predicated region
      $region13: #{tpu_custom_call.1} parent=11 // pred_check
        %p172 = pneg %p110
      $region14: #{tpu_custom_call.1} parent=11 // pred_check_branch
        %174 = sbr.rel (%p172) target = $region16
      $region15: #{tpu_custom_call.1} parent=11 // pred_region
        _
      $region16: #{tpu_custom_call.1} parent=11 // pred_fallthru
        _
      // Predicated region
      $region17: #{tpu_custom_call.1} parent=11 // pred_check
        %p175 = pneg %p131
      $region18: #{tpu_custom_call.1} parent=11 // pred_check_branch
        %177 = sbr.rel (%p175) target = $region20
      $region19: #{tpu_custom_call.1} parent=11 // pred_region
        _
      $region20: #{tpu_custom_call.1} parent=11 // pred_fallthru
        _
    $region12: #{tpu_custom_call.1} parent=5 // pred_fallthru
      _
    %p178 = scmp.lt.s32.totalorder %s11, 4
    // Predicated region
    $region21: #{tpu_custom_call.1} parent=5 // pred_check
      %p179 = pneg %p178
    $region22: #{tpu_custom_call.1} parent=5 // pred_check_branch
      %181 = sbr.rel (%p179) target = $region24
    $region23: #{tpu_custom_call.1} parent=5 // pred_region
      // Predicated region
      $region25: #{tpu_custom_call.1} parent=23 // pred_check
        %p182 = pneg %p31
      $region26: #{tpu_custom_call.1} parent=23 // pred_check_branch
        %184 = sbr.rel (%p182) target = $region28
      $region27: #{tpu_custom_call.1} parent=23 // pred_region
        %s185 = smul.u32 2, %s11
        %p186 = scmp.lt.s32.totalorder %s185, 7
        %s187 = scalar_select %p186, %s185, 7
        %s188 = smul.addr %s187, 8
        %s189 = scalar_lea.vmem %s0, %s188
        %s190 = smul.u32 2, %s11
      $region28: #{tpu_custom_call.1} parent=23 // pred_fallthru
        _
      // Predicated region
      $region29: #{tpu_custom_call.1} parent=23 // pred_check
        %p191 = pneg %p57
      $region30: #{tpu_custom_call.1} parent=23 // pred_check_branch
        %193 = sbr.rel (%p191) target = $region32
      $region31: #{tpu_custom_call.1} parent=23 // pred_region
        %s194 = smul.u32 2, %s11
        %p195 = scmp.lt.s32.totalorder %s194, 7
        %s196 = scalar_select %p195, %s194, 7
        %s197 = smul.addr %s196, 8
        %s198 = scalar_lea.vmem %s1, %s197
        %s199 = smul.u32 2, %s11
      $region32: #{tpu_custom_call.1} parent=23 // pred_fallthru
        _
      // Predicated region
      $region33: #{tpu_custom_call.1} parent=23 // pred_check
        %p200 = pneg %p83
      $region34: #{tpu_custom_call.1} parent=23 // pred_check_branch
        %202 = sbr.rel (%p200) target = $region36
      $region35: #{tpu_custom_call.1} parent=23 // pred_region
        %s203 = smul.u32 2, %s11
        %p204 = scmp.lt.s32.totalorder %s203, 7
        %s205 = scalar_select %p204, %s203, 7
        %s206 = smul.addr %s205, 8
        %s207 = scalar_lea.vmem %s2, %s206
        %s208 = smul.u32 2, %s11
      $region36: #{tpu_custom_call.1} parent=23 // pred_fallthru
        _
    $region24: #{tpu_custom_call.1} parent=5 // pred_fallthru
      _
    %p209 = scmp.le.s32.totalorder 1, %s11
    %p210 = scmp.lt.s32.totalorder %s11, 5
    %p211 = pnand %p209, %p210
    %p212 = pneg %p211
    // Predicated region
    $region37: #{tpu_custom_call.1} parent=5 // pred_check
      _
    $region38: #{tpu_custom_call.1} parent=5 // pred_check_branch
      %214 = sbr.rel (%p211) target = $region40
    $region39: #{tpu_custom_call.1} parent=5 // pred_region
      %s215 = ssub.s32 %s11, 1
      %s216 = smul.u32 2, %s16
      %p217 = scmp.lt.s32.totalorder %s216, 7
      %s218 = scalar_select %p217, %s216, 7
      %s219 = smul.addr %s218, 8
      %s220 = scalar_lea.vmem %s0, %s219
      %p221 = pneg %p37
      %p222 = pneg %p34
      %s223 = smul.u32 2, %s16
      %p224 = scmp.lt.s32.totalorder %s223, 7
      %s225 = scalar_select %p224, %s223, 7
      %s226 = smul.addr %s225, 8
      %s227 = scalar_lea.vmem %s1, %s226
      %p228 = pneg %p63
      %p229 = pneg %p60
      %s230 = smul.u32 2, %s16
      %p231 = scmp.lt.s32.totalorder %s230, 7
      %s232 = scalar_select %p231, %s230, 7
      %s233 = smul.addr %s232, 8
      %s234 = scalar_lea.vmem %s2, %s233
      %p235 = pneg %p89
      %p236 = pneg %p86
      %p237 = pneg %p110
      %p238 = pneg %p107
      %p239 = pneg %p131
      %p240 = pneg %p128
      %p241 = pneg %p157
      %p242 = pneg %p154
      %s243 = smul.u32 2, %s16
      %p244 = scmp.lt.s32.totalorder %s243, 7
      %s245 = scalar_select %p244, %s243, 7
      %s246 = smul.addr %s245, 8
      %s247 = scalar_lea.vmem %s5, %s246
      %s248 = smul.u32 2, %s16
      %p249 = scmp.lt.s32.totalorder %s248, 7
      %s250 = scalar_select %p249, %s248, 7
      %s251 = smul.addr %s250, 8
      %s252 = scalar_lea.vmem %s0, %s251
      %s253 = smul.u32 2, %s16
      %s254 = smul.u32 2, %s16
      %p255 = scmp.lt.s32.totalorder %s254, 7
      %s256 = scalar_select %p255, %s254, 7
      %s257 = smul.addr %s256, 8
      %s258 = scalar_lea.vmem %s1, %s257
      %s259 = smul.u32 2, %s16
      %s260 = smul.u32 2, %s16
      %p261 = scmp.lt.s32.totalorder %s260, 7
      %s262 = scalar_select %p261, %s260, 7
      %s263 = smul.addr %s262, 8
      %s264 = scalar_lea.vmem %s2, %s263
      %s265 = smul.u32 2, %s16
      %s266 = smul.u32 2, %s16
      %p267 = scmp.lt.s32.totalorder %s266, 7
      %s268 = scalar_select %p267, %s266, 7
      %s269 = smul.addr %s268, 8
      %s270 = scalar_lea.vmem %s5, %s269
      %s271 = smul.u32 2, %s16
      %v272 = vld [vmem:[%s252] sm:$0xff]
      %v273 = vld [vmem:[%s252 + $0x8] sm:$0xff]
      %vm274 = vcmask 261120
      %275 = vst.msk [vmem:[#allocation2] sm:$0xff] %vm274, %v272
      %276 = vst.msk [vmem:[#allocation2 + $0x8] sm:$0xff] %vm274, %v273
      %v277 = vld [vmem:[#allocation2] sm:$0xff]
      %v278 = vld [vmem:[#allocation2 + $0x8] sm:$0xff]
      %v279 = vld [vmem:[%s258] sm:$0xff]
      %v280 = vld [vmem:[%s258 + $0x8] sm:$0xff]
      %v281 = vadd.f32 %v277, %v279
      %v282 = vadd.f32 %v278, %v280
      %283 = vst.msk [vmem:[#allocation2] sm:$0xff] %vm274, %v281
      %284 = vst.msk [vmem:[#allocation2 + $0x8] sm:$0xff] %vm274, %v282
      %v285 = vld [vmem:[#allocation2] sm:$0xff]
      %v286 = vld [vmem:[#allocation2 + $0x8] sm:$0xff]
      %v287 = vld [vmem:[%s264] sm:$0xff]
      %v288 = vld [vmem:[%s264 + $0x8] sm:$0xff]
      %v289 = vadd.f32 %v285, %v287
      %v290 = vadd.f32 %v286, %v288
      %291 = vst.msk [vmem:[#allocation2] sm:$0xff] %vm274, %v289
      %292 = vst.msk [vmem:[#allocation2 + $0x8] sm:$0xff] %vm274, %v290
      %v293 = vld [vmem:[#allocation2] sm:$0xff]
      %v294 = vld [vmem:[#allocation2 + $0x8] sm:$0xff]
      %v295 = vld [vmem:[%s3] sm:$0xff]
      %v296 = vld [vmem:[%s3 + $0x8] sm:$0xff]
      %v297 = vld [vmem:[%s3 + $0x10] sm:$0xff]
      %v298 = vld [vmem:[%s3 + $0x18] sm:$0xff]
      %v300 = vsel %vm274, %v293, 0
      %v303 = vsel %vm274, %v294, 0
      %305 = vmatprep.subr.mxu0 0.0
      %306 = vmatpush1.msra.mxu0 0.0
      %307 = vmatprep.subr.mxu0 0.0
      %308 = vmatpush1.msra.mxu0 0.0
      %309 = vmatprep.subr.mxu0 0.0
      %310 = vmatpush1.msra.mxu0 0.0
      %311 = vmatprep.subr.mxu0 0.0
      %312 = vmatpush1.msra.mxu0 0.0
      %313 = vmatprep.subr.mxu0 0.0
      %314 = vmatpush1.msra.mxu0 0.0
      %315 = vmatprep.subr.mxu0 0.0
      %316 = vmatpush1.msra.mxu0 0.0
      %317 = vmatprep.subr.mxu0 0.0
      %318 = vmatpush1.msra.mxu0 0.0
      %319 = vmatprep.subr.mxu0 0.0
      %320 = vmatpush1.msra.mxu0 0.0
      %321 = vmatprep.subr.mxu0 0.0
      %322 = vmatpush1.msra.mxu0 0.0
      %323 = vmatprep.subr.mxu0 0.0
      %324 = vmatpush1.msra.mxu0 0.0
      %325 = vmatprep.subr.mxu0 0.0
      %326 = vmatpush1.msra.mxu0 0.0
      %327 = vmatprep.subr.mxu0 0.0
      %328 = vmatpush1.msra.mxu0 0.0
      %329 = vmatprep.subr.mxu0 0.0
      %330 = vmatpush1.msra.mxu0 %v298
      %331 = vmatprep.subr.mxu0 0.0
      %332 = vmatpush1.msra.mxu0 %v297
      %333 = vmatprep.subr.mxu0 0.0
      %334 = vmatpush1.msra.mxu0 %v296
      %335 = vmatprep.subr.mxu0 0.0
      %336 = vmatpush1.msra.mxu0 %v295
      %337 = vmatprep.subr.mxu0 0.0
      %338 = vmatpush2.msra.mxu0 0.0
      %339 = vmatprep.subr.mxu0 0.0
      %340 = vmatpush2.msra.mxu0 0.0
      %341 = vmatprep.subr.mxu0 0.0
      %342 = vmatpush2.msra.mxu0 0.0
      %343 = vmatprep.subr.mxu0 0.0
      %344 = vmatpush2.msra.mxu0 0.0
      %345 = vmatprep.subr.mxu0 0.0
      %346 = vmatpush2.msra.mxu0 0.0
      %347 = vmatprep.subr.mxu0 0.0
      %348 = vmatpush2.msra.mxu0 0.0
      %349 = vmatprep.subr.mxu0 0.0
      %350 = vmatpush2.msra.mxu0 0.0
      %351 = vmatprep.subr.mxu0 0.0
      %352 = vmatpush2.msra.mxu0 0.0
      %353 = vmatprep.subr.mxu0 0.0
      %354 = vmatpush2.msra.mxu0 0.0
      %355 = vmatprep.subr.mxu0 0.0
      %356 = vmatpush2.msra.mxu0 0.0
      %357 = vmatprep.subr.mxu0 0.0
      %358 = vmatpush2.msra.mxu0 0.0
      %359 = vmatprep.subr.mxu0 0.0
      %360 = vmatpush2.msra.mxu0 0.0
      %361 = vmatprep.subr.mxu0 0.0
      %362 = vmatpush2.msra.mxu0 0.0
      %363 = vmatprep.subr.mxu0 0.0
      %364 = vmatpush2.msra.mxu0 0.0
      %365 = vmatprep.subr.mxu0 0.0
      %366 = vmatpush2.msra.mxu0 0.0
      %367 = vmatprep.subr.mxu0 0.0
      %368 = vmatpush2.msra.mxu0 0.0
      %369 = vmatprep.mubr.f32.mxu0 0.0
      %370 = vmatmul.mubr.f32.gmra.mxu0 %v300
      %v371 = vpop.f32.mrf.mxu0
      %v372 = vadd.f32 0.0, %v371
      %v373 = vpop.f32.mrf.mxu0
      %374 = vmatprep.mubr.f32.mxu0 0.0
      %375 = vmatmul.mubr.f32.gmra.mxu0 %v303
      %v376 = vpop.f32.mrf.mxu0
      %v377 = vadd.f32 0.0, %v376
      %v378 = vpop.f32.mrf.mxu0
      %379 = vdwg.mxu0
      %v380 = vmul.f32 %v372, 0.33333334
      %v381 = vmul.f32 %v377, 0.33333334
      %v382 = vld [vmem:[%s4] sm:$0x1]
      %v384 = vlaneseq
      %v385 = vshrl.u32 %v384, 7
      %v386 = vsub.s32 0, %v385
      %v387 = vrot.slane %v382, %v386
      %v389 = vadd.f32 %v380, %v387
      %v390 = vadd.f32 %v381, %v387
      %vm391 = vcmask 130048
      %392 = vst.msk [vmem:[%s270] sm:$0xff] %vm391, %v389
      %393 = vst.msk [vmem:[%s270 + $0x8] sm:$0xff] %vm391, %v390
      %s394 = smul.u32 2, %s16
      %p395 = scmp.lt.s32.totalorder %s394, 7
      %s396 = scalar_select %p395, %s394, 7
      %s397 = smul.addr %s396, 8
      %s398 = scalar_lea.vmem %s5, %s397
      // Predicated region
      $region41: #{tpu_custom_call.1} parent=39 // pred_check
        %p399 = pneg %p154
      $region42: #{tpu_custom_call.1} parent=39 // pred_check_branch
        %401 = sbr.rel (%p399) target = $region44
      $region43: #{tpu_custom_call.1} parent=39 // pred_region
        %s402 = smul.u32 2, %s16
      $region44: #{tpu_custom_call.1} parent=39 // pred_fallthru
        _
    $region40: #{tpu_custom_call.1} parent=5 // pred_fallthru
      _
    %p403 = scmp.le.s32.totalorder 2, %s11
    // Predicated region
    $region45: #{tpu_custom_call.1} parent=5 // pred_check
      %p404 = pneg %p403
    $region46: #{tpu_custom_call.1} parent=5 // pred_check_branch
      %406 = sbr.rel (%p404) target = $region48
    $region47: #{tpu_custom_call.1} parent=5 // pred_region
      %s407 = ssub.s32 %s11, 2
      // Predicated region
      $region49: #{tpu_custom_call.1} parent=47 // pred_check
        %p408 = pneg %p160
      $region50: #{tpu_custom_call.1} parent=47 // pred_check_branch
        %410 = sbr.rel (%p408) target = $region52
      $region51: #{tpu_custom_call.1} parent=47 // pred_region
        %s411 = smul.u32 2, %s17
        %p412 = scmp.lt.s32.totalorder %s411, 7
        %s413 = scalar_select %p412, %s411, 7
        %s414 = smul.addr %s413, 8
        %s415 = scalar_lea.vmem %s5, %s414
      $region52: #{tpu_custom_call.1} parent=47 // pred_fallthru
        _
    $region48: #{tpu_custom_call.1} parent=5 // pred_fallthru
      _
  $region6: #{tpu_custom_call.1} parent=0 // loop_footer
    %s15 = sadd.s32 1, %s11
  $region7: #{tpu_custom_call.1} parent=0 // loop_footer_branch
    %10 = sbr.rel target = $region3
  $region8: #{tpu_custom_call.1} parent=0 // loop_exit
    _

</llo_original>
